<compile_context>
chip_gen: v7x
topology: tpu7x:2x2x1
jax: 0.10.0
libtpu: 0.0.40
codegen_flags: <defaults>
</compile_context>

<pallas_src>
import jax
import jax.numpy as jnp
from jax.experimental import pallas as pl
from jax.experimental.pallas import tpu as pltpu

HIDDEN = 512
BN_EPS = 1e-5


def _round_up(x, m):
    return ((x + m - 1) // m) * m


def _cdiv(a, b):
    return (a + b - 1) // b


def _vmem_capacity_bytes():
    """Best-effort VMEM capacity query; conservative (v7x-sized) fallback."""
    try:
        cap = int(pltpu.get_tpu_info().vmem_capacity_bytes)
        if cap > 0:
            return cap
    except Exception:
        pass
    return 64 * 1024 * 1024


def _pick_block_rows(n, feats, out_cols, out_bytes, vmem_limit, max_rows):
    """Largest row tile that fits the VMEM budget, >=2 grid steps if possible."""
    # Resident operands (Pallas double-buffers inputs by default).
    weight_bytes = 2 * (2 * (feats * HIDDEN + HIDDEN * out_cols)   # bf16 w1, w2
                        + 4 * (HIDDEN + out_cols))                  # f32 b1, b2
    # Per-row cost of one grid step.
    per_row = (2 * 4 * feats                 # x f32 tile (double-buffered)
               + 2 * feats                   # in-kernel bf16 copy of x
               + (4 + 2) * HIDDEN            # h in f32 + bf16 for 2nd matmul
               + 2 * out_bytes * out_cols)   # output tile (double-buffered)
    budget = int(vmem_limit * 0.7) - weight_bytes   # headroom for scratch/sems
    tm = max(16, min(max_rows, budget // per_row))
    tm = (tm // 16) * 16                      # 16-row alignment (bf16 packing)

    n16 = _round_up(n, 16)
    if tm >= n16:
        # A single tile would cover everything: split into two tiles when there
        # is enough work so both v7x TensorCores get a grid step.
        tm = _round_up(_cdiv(n16, 2), 16) if n16 >= 32 else n16
    return tm


def _mlp_kernel(x_ref, w1_ref, b1_ref, w2_ref, b2_ref, o_ref):
    # x_ref: (TM, F) f32   w1_ref: (F, 512) bf16 (BN folded)   b1_ref: (1, 512) f32
    # w2_ref: (512, O) bf16   b2_ref: (1, O) f32   o_ref: (TM, O) out_dtype
    x = x_ref[...].astype(jnp.bfloat16)        # in-kernel cast (halves x traffic)

    # Linear 1 (BatchNorm already folded into w1/b1). MXU bf16 -> f32 accum.
    h = jnp.dot(x, w1_ref[...], preferred_element_type=jnp.float32) + b1_ref[...]

    # ReLU (f32 on the VPU). Dropout: identity in eval mode.
    h = jnp.maximum(h, 0.0)

    # Linear 2 (MXU bf16 -> f32 accum).
    o = jnp.dot(h.astype(w2_ref.dtype), w2_ref[...],
                preferred_element_type=jnp.float32) + b2_ref[...]
    o_ref[...] = o.astype(o_ref.dtype)


def mlp_forward(x, params, *, block_rows=None, out_dtype=jnp.float32):
    """x: (batch, num_frames, num_features) float32."""
    batch, frames, feats = x.shape
    n = batch * frames

    w1, b1, gamma, beta, mean, var, w2, b2 = params
    out_dim = w2.shape[1]
    out_bytes = jnp.dtype(out_dtype).itemsize

    # --- Fold BatchNorm (eval-mode running stats + affine) into Linear1 ------
    inv_std = jax.lax.rsqrt(var + BN_EPS)
    scale = gamma * inv_std
    w1_bf = (w1 * scale).astype(jnp.bfloat16)
    b1_folded = (b1 - mean) * scale + beta
    w2_bf = w2.astype(jnp.bfloat16)

    # --- Generation-aware VMEM limit / row tile --------------------------------
    vmem_cap = _vmem_capacity_bytes()
    if vmem_cap >= 100 * 1024 * 1024:        # v5e / v6e: 128 MiB physical
        vmem_limit = 100 * 1024 * 1024
        max_rows = 8192
    else:                                     # v7x: 64 MiB per TensorCore
        vmem_limit = 48 * 1024 * 1024
        max_rows = 4096
    tm = block_rows if block_rows is not None else _pick_block_rows(
        n, feats, out_dim, out_bytes, vmem_limit, max_rows)

    # --- No row padding / no wrapper cast: reshape is free; Pallas masks the ---
    # --- ragged last block (out-of-range output rows are dropped). -------------
    x2d = x.reshape(n, feats)
    grid = (_cdiv(n, tm),)

    flops = 2 * n * (feats * HIDDEN + HIDDEN * out_dim)
    bytes_accessed = (
        n * feats * 4                        # x (f32)
        + feats * HIDDEN * 2                 # w1 (bf16)
        + HIDDEN * out_dim * 2               # w2 (bf16)
        + (HIDDEN + out_dim) * 4             # biases (f32)
        + n * out_dim * out_bytes            # out
    )

    out2d = pl.pallas_call(
        _mlp_kernel,
        out_shape=jax.ShapeDtypeStruct((n, out_dim), out_dtype),
        grid=grid,
        in_specs=[
            pl.BlockSpec((tm, feats), lambda i: (i, 0)),        # x: row-tiled f32
            pl.BlockSpec((feats, HIDDEN), lambda i: (0, 0)),    # w1: resident
            pl.BlockSpec((1, HIDDEN), lambda i: (0, 0)),        # b1: resident
            pl.BlockSpec((HIDDEN, out_dim), lambda i: (0, 0)),  # w2: resident
            pl.BlockSpec((1, out_dim), lambda i: (0, 0)),       # b2: resident
        ],
        out_specs=pl.BlockSpec((tm, out_dim), lambda i: (i, 0)),
        compiler_params=pltpu.CompilerParams(
            dimension_semantics=("parallel",),
            vmem_limit_bytes=vmem_limit,
        ),
        cost_estimate=pl.CostEstimate(
            flops=flops, transcendentals=0, bytes_accessed=bytes_accessed),
    )(x2d, w1_bf, b1_folded, w2_bf, b2)

    return out2d.reshape(batch, frames, out_dim)


def init_params(key, input_dim, output_dim):
    """Deterministic init mirroring the PyTorch module's parameter shapes.

    Linear weights are stored transposed, i.e. (in, out), so the kernel can do
    x @ W directly (PyTorch stores (out, in) and computes x @ W.T).
    """
    k1, k2, k3, k4 = jax.random.split(key, 4)

    # Linear(input_dim, 512): kaiming-uniform-ish bounds like PyTorch default
    bound1 = 1.0 / jnp.sqrt(input_dim)
    w1 = jax.random.uniform(k1, (input_dim, HIDDEN), jnp.float32, -bound1, bound1)
    b1 = jax.random.uniform(k2, (1, HIDDEN), jnp.float32, -bound1, bound1)

    # BatchNorm1d(512): weight=1, bias=0, running_mean=0, running_var=1
    gamma = jnp.ones((1, HIDDEN), jnp.float32)
    beta = jnp.zeros((1, HIDDEN), jnp.float32)
    mean = jnp.zeros((1, HIDDEN), jnp.float32)
    var = jnp.ones((1, HIDDEN), jnp.float32)

    # Linear(512, output_dim)
    bound2 = 1.0 / jnp.sqrt(HIDDEN)
    w2 = jax.random.uniform(k3, (HIDDEN, output_dim), jnp.float32, -bound2, bound2)
    b2 = jax.random.uniform(k4, (1, output_dim), jnp.float32, -bound2, bound2)

    return (w1, b1, gamma, beta, mean, var, w2, b2)


if __name__ == "__main__":
    key = jax.random.PRNGKey(0)
    kx, kp = jax.random.split(key)

    batch, num_frames, num_features = 2, 8, 32
    output_dim = 64

    x = jax.random.normal(kx, (batch, num_frames, num_features), jnp.float32)
    params = init_params(kp, num_features, output_dim)

    out = mlp_forward(x, params)
    jax.block_until_ready(out)

    # Pure-JAX reference with the same eval-mode math, BN folding, and bf16
    # MXU operands (f32 accumulation), so the comparison is apples-to-apples.
    w1, b1, gamma, beta, mean, var, w2, b2 = params
    inv_std = jax.lax.rsqrt(var + BN_EPS)
    scale = gamma * inv_std
    w1f = (w1 * scale).astype(jnp.bfloat16)
    b1f = (b1 - mean) * scale + beta
    x2d = x.reshape(-1, num_features).astype(jnp.bfloat16)
    h = jnp.dot(x2d, w1f, preferred_element_type=jnp.float32) + b1f
    h = jnp.maximum(h, 0.0)
    ref = jnp.dot(h.astype(jnp.bfloat16), w2.astype(jnp.bfloat16),
                  preferred_element_type=jnp.float32) + b2
    ref = ref.reshape(batch, num_frames, output_dim)

    assert out.shape == (batch, num_frames, output_dim)
    assert out.dtype == jnp.float32
    assert jnp.allclose(out, ref, atol=1e-2, rtol=1e-2)

    print("KERNEL_OK")
</pallas_src>

<mosaic_0001>
module attributes {stable_mosaic.version = 11 : i64} {
  func.func @_mlp_kernel(%arg0: i32, %arg1: memref<16x32xf32, #tpu.memory_space<vmem>>, %arg2: memref<32x512xbf16, #tpu.memory_space<vmem>>, %arg3: memref<1x512xf32, #tpu.memory_space<vmem>>, %arg4: memref<512x64xbf16, #tpu.memory_space<vmem>>, %arg5: memref<1x64xf32, #tpu.memory_space<vmem>>, %arg6: memref<16x64xf32, #tpu.memory_space<vmem>>) attributes {dimension_semantics = [#tpu.dimension_semantics<parallel>], iteration_bounds = array<i64: 1>, scalar_prefetch = 0 : i64, scratch_operands = 0 : i64, tpu.core_type = #tpu.core_type<tc>, window_params = [{transform_indices = @transform_0, window_bounds = array<i64: 16, 32>}, {pipeline_mode = #tpu.pipeline_mode<synchronous>, transform_indices = @transform_1, window_bounds = array<i64: 32, 512>}, {pipeline_mode = #tpu.pipeline_mode<synchronous>, transform_indices = @transform_2, window_bounds = array<i64: 1, 512>}, {pipeline_mode = #tpu.pipeline_mode<synchronous>, transform_indices = @transform_3, window_bounds = array<i64: 512, 64>}, {pipeline_mode = #tpu.pipeline_mode<synchronous>, transform_indices = @transform_4, window_bounds = array<i64: 1, 64>}, {transform_indices = @transform_5, window_bounds = array<i64: 16, 64>}]} {
    %c0 = arith.constant 0 : index
    %c0_0 = arith.constant 0 : index
    %0 = vector.load %arg1[%c0, %c0_0] : memref<16x32xf32, #tpu.memory_space<vmem>>, vector<16x32xf32>
    %1 = arith.truncf %0 : vector<16x32xf32> to vector<16x32xbf16>
    %c0_1 = arith.constant 0 : index
    %c0_2 = arith.constant 0 : index
    %2 = vector.load %arg2[%c0_1, %c0_2] : memref<32x512xbf16, #tpu.memory_space<vmem>>, vector<32x512xbf16>
    %cst = arith.constant dense<0.000000e+00> : vector<16x512xf32>
    %3 = tpu.matmul %1, %2, %cst {dimension_numbers = #tpu.dot_dimension_numbers<[1], [0], [0], [1], [0, 0, 1, 1], [], []>} : vector<16x32xbf16>, vector<32x512xbf16>, vector<16x512xf32> -> vector<16x512xf32>
    %c0_3 = arith.constant 0 : index
    %c0_4 = arith.constant 0 : index
    %4 = vector.load %arg3[%c0_3, %c0_4] : memref<1x512xf32, #tpu.memory_space<vmem>>, vector<1x512xf32>
    %5 = vector.broadcast %4 : vector<1x512xf32> to vector<16x512xf32>
    %6 = arith.addf %3, %5 : vector<16x512xf32>
    %cst_5 = arith.constant 0.000000e+00 : f32
    %7 = vector.broadcast %cst_5 : f32 to vector<16x512xf32>
    %8 = arith.maximumf %6, %7 : vector<16x512xf32>
    %9 = arith.truncf %8 : vector<16x512xf32> to vector<16x512xbf16>
    %c0_6 = arith.constant 0 : index
    %c0_7 = arith.constant 0 : index
    %10 = vector.load %arg4[%c0_6, %c0_7] : memref<512x64xbf16, #tpu.memory_space<vmem>>, vector<512x64xbf16>
    %cst_8 = arith.constant dense<0.000000e+00> : vector<16x64xf32>
    %11 = tpu.matmul %9, %10, %cst_8 {dimension_numbers = #tpu.dot_dimension_numbers<[1], [0], [0], [1], [0, 0, 1, 1], [], []>} : vector<16x512xbf16>, vector<512x64xbf16>, vector<16x64xf32> -> vector<16x64xf32>
    %c0_9 = arith.constant 0 : index
    %c0_10 = arith.constant 0 : index
    %12 = vector.load %arg5[%c0_9, %c0_10] : memref<1x64xf32, #tpu.memory_space<vmem>>, vector<1x64xf32>
    %13 = vector.broadcast %12 : vector<1x64xf32> to vector<16x64xf32>
    %14 = arith.addf %11, %13 : vector<16x64xf32>
    %c0_11 = arith.constant 0 : index
    %c0_12 = arith.constant 0 : index
    %15 = vector.load %arg6[%c0_11, %c0_12] : memref<16x64xf32, #tpu.memory_space<vmem>>, vector<16x64xf32>
    tpu.vector_store %arg6[%c0_11, %c0_12], %14 {strides = array<i32>} : memref<16x64xf32, #tpu.memory_space<vmem>>, vector<16x64xf32>,
    return
  }
  func.func @transform_0(%arg0: i32) -> (i32, i32) {
    %c0_i32 = arith.constant 0 : i32
    %c0_i32_0 = arith.constant 0 : i32
    return %arg0, %c0_i32 : i32, i32
  }
  func.func @transform_1(%arg0: i32) -> (i32, i32) {
    %c0_i32 = arith.constant 0 : i32
    %c0_i32_0 = arith.constant 0 : i32
    %c0_i32_1 = arith.constant 0 : i32
    return %c0_i32, %c0_i32_0 : i32, i32
  }
  func.func @transform_2(%arg0: i32) -> (i32, i32) {
    %c0_i32 = arith.constant 0 : i32
    %c0_i32_0 = arith.constant 0 : i32
    %c0_i32_1 = arith.constant 0 : i32
    return %c0_i32, %c0_i32_0 : i32, i32
  }
  func.func @transform_3(%arg0: i32) -> (i32, i32) {
    %c0_i32 = arith.constant 0 : i32
    %c0_i32_0 = arith.constant 0 : i32
    %c0_i32_1 = arith.constant 0 : i32
    return %c0_i32, %c0_i32_0 : i32, i32
  }
  func.func @transform_4(%arg0: i32) -> (i32, i32) {
    %c0_i32 = arith.constant 0 : i32
    %c0_i32_0 = arith.constant 0 : i32
    %c0_i32_1 = arith.constant 0 : i32
    return %c0_i32, %c0_i32_0 : i32, i32
  }
  func.func @transform_5(%arg0: i32) -> (i32, i32) {
    %c0_i32 = arith.constant 0 : i32
    %c0_i32_0 = arith.constant 0 : i32
    return %arg0, %c0_i32 : i32, i32
  }
}

</mosaic_0001>

<llo_original>
// kernel: tpu_custom_call.1
$region0: #{tpu_custom_call.1}
  #allocation0 [shape = 'u32[]', space=smem, size = 0x4, offset = 0x4, fixed_abs, tag = 'smem constant byte address 0x4 - core index']
  #allocation1 [shape = 'u32[144,128]{1,0:T(1,128)}', space=vmem, size = 0x12000, scoped, tag = 'internal scratch']
  %s0 = inlined_call_operand.vmem [shape: f32[16,32], index: 0, kind: input, shape index: {}]
  %s1 = inlined_call_operand.vmem [shape: bf16[32,512], index: 1, kind: input, shape index: {}]
  %s2 = inlined_call_operand.vmem [shape: f32[1,512], index: 2, kind: input, shape index: {}]
  %s3 = inlined_call_operand.vmem [shape: bf16[512,64], index: 3, kind: input, shape index: {}]
  %s4 = inlined_call_operand.vmem [shape: f32[1,64], index: 4, kind: input, shape index: {}]
  %s5 = inlined_call_operand.hbm [shape: f32[16,64], index: 5, kind: output, shape index: {}]
  %s6 = sld [smem:[#allocation0]]
  $region30: #{tpu_custom_call.1} parent=0
    _
  %s8 = ssub.s32 1, %s6
  %s9 = scalar_select 0, %s8, %s6
  $region1: #{tpu_custom_call.1} parent=0
    #allocation2 [shape = 'u8[8192]{0}', space=vmem, size = 0x2000, scoped, tag = 'output window, operand 0, single buffered']
    #allocation3 [shape = 's32[1]{0}', space=sflag, size = 0x4, scoped, tag = 'scoped memory for tpu_custom_call.1']
    %10 = vsyncpa [#allocation3], 0
    // Predicated region
    $region2: #{tpu_custom_call.1} parent=1 // pred_check
      _
    $region3: #{tpu_custom_call.1} parent=1 // pred_check_branch
      %12 = sbr.rel (0) target = $region5
    $region4: #{tpu_custom_call.1} parent=1 // pred_region
      _
    $region5: #{tpu_custom_call.1} parent=1 // pred_fallthru
      _
    // Predicated region
    $region6: #{tpu_custom_call.1} parent=1 // pred_check
      _
    $region7: #{tpu_custom_call.1} parent=1 // pred_check_branch
      %14 = sbr.rel (0) target = $region9
    $region8: #{tpu_custom_call.1} parent=1 // pred_region
      _
    $region9: #{tpu_custom_call.1} parent=1 // pred_fallthru
      _
    // Predicated region
    $region10: #{tpu_custom_call.1} parent=1 // pred_check
      _
    $region11: #{tpu_custom_call.1} parent=1 // pred_check_branch
      %16 = sbr.rel (0) target = $region13
    $region12: #{tpu_custom_call.1} parent=1 // pred_region
      _
    $region13: #{tpu_custom_call.1} parent=1 // pred_fallthru
      _
    // Predicated region
    $region14: #{tpu_custom_call.1} parent=1 // pred_check
      _
    $region15: #{tpu_custom_call.1} parent=1 // pred_check_branch
      %18 = sbr.rel (0) target = $region17
    $region16: #{tpu_custom_call.1} parent=1 // pred_region
      _
    $region17: #{tpu_custom_call.1} parent=1 // pred_fallthru
      _
    // Predicated region
    $region18: #{tpu_custom_call.1} parent=1 // pred_check
      _
    $region19: #{tpu_custom_call.1} parent=1 // pred_check_branch
      %20 = sbr.rel (0) target = $region21
    $region20: #{tpu_custom_call.1} parent=1 // pred_region
      _
    $region21: #{tpu_custom_call.1} parent=1 // pred_fallthru
      _
    %v22 = vld [vmem:[%s0] sm:$0xff]
    %v23 = vld [vmem:[%s0 + $0x8] sm:$0xff]
    %v24 = vpack.c.bf16 %v23, %v22
    %v25 = vld [vmem:[%s1] sm:$0xff]
    %v26 = vld [vmem:[%s1 + $0x8] sm:$0xff]
    %v27 = vld [vmem:[%s1 + $0x10] sm:$0xff]
    %v28 = vld [vmem:[%s1 + $0x18] sm:$0xff]
    %v29 = vld [vmem:[%s1 + $0x20] sm:$0xff]
    %v30 = vld [vmem:[%s1 + $0x28] sm:$0xff]
    %v31 = vld [vmem:[%s1 + $0x30] sm:$0xff]
    %v32 = vld [vmem:[%s1 + $0x38] sm:$0xff]
    %v33 = vld [vmem:[%s2] sm:$0xf]
    %v35 = vlaneseq
    %v36 = vshrl.u32 %v35, 7
    %v37 = vsub.s32 0, %v36
    %v38 = vrot.slane %v33, %v37
    %v39 = vlaneseq
    %v40 = vshrl.u32 %v39, 7
    %v41 = vsub.s32 1, %v40
    %v42 = vrot.slane %v33, %v41
    %v43 = vlaneseq
    %v44 = vshrl.u32 %v43, 7
    %v45 = vsub.s32 2, %v44
    %v46 = vrot.slane %v33, %v45
    %v47 = vlaneseq
    %v48 = vshrl.u32 %v47, 7
    %v49 = vsub.s32 3, %v48
    %v50 = vrot.slane %v33, %v49
    %v63 = vunpack.c.l.b16 %v25
    %v64 = vunpack.c.h.b16 %v25
    %v65 = vunpack.c.l.b16 %v26
    %v66 = vunpack.c.h.b16 %v26
    %v67 = vunpack.c.l.b16 %v27
    %v68 = vunpack.c.h.b16 %v27
    %v69 = vunpack.c.l.b16 %v28
    %v70 = vunpack.c.h.b16 %v28
    %v71 = vunpack.c.l.b16 %v29
    %v72 = vunpack.c.h.b16 %v29
    %v73 = vunpack.c.l.b16 %v30
    %v74 = vunpack.c.h.b16 %v30
    %v75 = vunpack.c.l.b16 %v31
    %v76 = vunpack.c.h.b16 %v31
    %v77 = vunpack.c.l.b16 %v32
    %v78 = vunpack.c.h.b16 %v32
    %v79 = vpack.c.b16 %v67, %v63
    %v80 = vpack.c.b16 %v68, %v64
    %v81 = vpack.c.b16 %v69, %v65
    %v82 = vpack.c.b16 %v70, %v66
    %v83 = vpack.c.b16 %v75, %v71
    %v84 = vpack.c.b16 %v76, %v72
    %v85 = vpack.c.b16 %v77, %v73
    %v86 = vpack.c.b16 %v78, %v74
    %vm95 = vcmask 261120
    %v97 = vsel %vm95, %v24, 0
    %99 = vmatprep.subr.bf16.mxu0 %v80
    %100 = vmatpush1.bf16.msra.mxu0 %v79
    %101 = vmatprep.subr.bf16.mxu0 %v84
    %102 = vmatpush1.bf16.msra.mxu0 %v83
    %103 = vmatprep.subr.bf16.mxu0 0
    %104 = vmatpush1.bf16.msra.mxu0 0
    %105 = vmatprep.subr.bf16.mxu0 0
    %106 = vmatpush1.bf16.msra.mxu0 0
    %107 = vmatprep.subr.bf16.mxu0 0
    %108 = vmatpush1.bf16.msra.mxu0 0
    %109 = vmatprep.subr.bf16.mxu0 0
    %110 = vmatpush1.bf16.msra.mxu0 0
    %111 = vmatprep.subr.bf16.mxu0 0
    %112 = vmatpush1.bf16.msra.mxu0 0
    %113 = vmatprep.subr.bf16.mxu0 0
    %114 = vmatpush1.bf16.msra.mxu0 0
    %115 = vmatprep.subr.bf16.mxu0 0
    %116 = vmatpush1.bf16.msra.mxu0 0
    %117 = vmatprep.subr.bf16.mxu0 0
    %118 = vmatpush1.bf16.msra.mxu0 0
    %119 = vmatprep.subr.bf16.mxu0 0
    %120 = vmatpush1.bf16.msra.mxu0 0
    %121 = vmatprep.subr.bf16.mxu0 0
    %122 = vmatpush1.bf16.msra.mxu0 0
    %123 = vmatprep.subr.bf16.mxu0 0
    %124 = vmatpush1.bf16.msra.mxu0 0
    %125 = vmatprep.subr.bf16.mxu0 0
    %126 = vmatpush1.bf16.msra.mxu0 0
    %127 = vmatprep.subr.bf16.mxu0 0
    %128 = vmatpush1.bf16.msra.mxu0 0
    %129 = vmatprep.subr.bf16.mxu0 0
    %130 = vmatpush1.bf16.msra.mxu0 0
    %131 = vmatprep.mubr.bf16.mxu0 0
    %132 = vmatmul.mubr.bf16.gmra.mrb[0].mxu0 %v97
    %v133 = vpop.f32.mrb[0].mxu0
    %v134 = vadd.f32 %v38, %v133
    %v135 = vpop.f32.mrb[0].mxu0
    %v136 = vadd.f32 %v42, %v135
    %v137 = vpop.f32.mrb[0].mxu0
    %v138 = vadd.f32 %v38, %v137
    %v139 = vpop.f32.mrb[0].mxu0
    %v140 = vadd.f32 %v42, %v139
    %141 = vdwg.mxu0
    %142 = vmatprep.subr.bf16.mxu0 %v82
    %143 = vmatpush1.bf16.msra.mxu0 %v81
    %144 = vmatprep.subr.bf16.mxu0 %v86
    %145 = vmatpush1.bf16.msra.mxu0 %v85
    %146 = vmatprep.subr.bf16.mxu0 0
    %147 = vmatpush1.bf16.msra.mxu0 0
    %148 = vmatprep.subr.bf16.mxu0 0
    %149 = vmatpush1.bf16.msra.mxu0 0
    %150 = vmatprep.subr.bf16.mxu0 0
    %151 = vmatpush1.bf16.msra.mxu0 0
    %152 = vmatprep.subr.bf16.mxu0 0
    %153 = vmatpush1.bf16.msra.mxu0 0
    %154 = vmatprep.subr.bf16.mxu0 0
    %155 = vmatpush1.bf16.msra.mxu0 0
    %156 = vmatprep.subr.bf16.mxu0 0
    %157 = vmatpush1.bf16.msra.mxu0 0
    %158 = vmatprep.subr.bf16.mxu0 0
    %159 = vmatpush1.bf16.msra.mxu0 0
    %160 = vmatprep.subr.bf16.mxu0 0
    %161 = vmatpush1.bf16.msra.mxu0 0
    %162 = vmatprep.subr.bf16.mxu0 0
    %163 = vmatpush1.bf16.msra.mxu0 0
    %164 = vmatprep.subr.bf16.mxu0 0
    %165 = vmatpush1.bf16.msra.mxu0 0
    %166 = vmatprep.subr.bf16.mxu0 0
    %167 = vmatpush1.bf16.msra.mxu0 0
    %168 = vmatprep.subr.bf16.mxu0 0
    %169 = vmatpush1.bf16.msra.mxu0 0
    %170 = vmatprep.subr.bf16.mxu0 0
    %171 = vmatpush1.bf16.msra.mxu0 0
    %172 = vmatprep.subr.bf16.mxu0 0
    %173 = vmatpush1.bf16.msra.mxu0 0
    %174 = vmatprep.mubr.bf16.mxu0 0
    %175 = vmatmul.mubr.bf16.gmra.mrb[0].mxu0 %v97
    %v176 = vpop.f32.mrb[0].mxu0
    %v177 = vadd.f32 %v46, %v176
    %v178 = vpop.f32.mrb[0].mxu0
    %v179 = vadd.f32 %v50, %v178
    %v180 = vpop.f32.mrb[0].mxu0
    %v181 = vadd.f32 %v46, %v180
    %v182 = vpop.f32.mrb[0].mxu0
    %v183 = vadd.f32 %v50, %v182
    %184 = vdwg.mxu0
    %v185 = vmax.f32 %v134, 0.0
    %v186 = vmax.f32 %v136, 0.0
    %v187 = vmax.f32 %v177, 0.0
    %v188 = vmax.f32 %v179, 0.0
    %v189 = vmax.f32 %v138, 0.0
    %v190 = vmax.f32 %v140, 0.0
    %v191 = vmax.f32 %v181, 0.0
    %v192 = vmax.f32 %v183, 0.0
    %v193 = vpack.c.bf16 %v189, %v185
    %v194 = vpack.c.bf16 %v190, %v186
    %v195 = vpack.c.bf16 %v191, %v187
    %v196 = vpack.c.bf16 %v192, %v188
    %v197 = vld [vmem:[%s3] sm:$0xf]
    %v198 = vld [vmem:[%s3 + $0x4] sm:$0xf]
    %v199 = vld [vmem:[%s3 + $0x8] sm:$0xf]
    %v200 = vld [vmem:[%s3 + $0xc] sm:$0xf]
    %v201 = vld [vmem:[%s3 + $0x10] sm:$0xf]
    %v202 = vld [vmem:[%s3 + $0x14] sm:$0xf]
    %v203 = vld [vmem:[%s3 + $0x18] sm:$0xf]
    %v204 = vld [vmem:[%s3 + $0x1c] sm:$0xf]
    %v205 = vld [vmem:[%s3 + $0x20] sm:$0xf]
    %v206 = vld [vmem:[%s3 + $0x24] sm:$0xf]
    %v207 = vld [vmem:[%s3 + $0x28] sm:$0xf]
    %v208 = vld [vmem:[%s3 + $0x2c] sm:$0xf]
    %v209 = vld [vmem:[%s3 + $0x30] sm:$0xf]
    %v210 = vld [vmem:[%s3 + $0x34] sm:$0xf]
    %v211 = vld [vmem:[%s3 + $0x38] sm:$0xf]
    %v212 = vld [vmem:[%s3 + $0x3c] sm:$0xf]
    %v213 = vld [vmem:[%s3 + $0x40] sm:$0xf]
    %v214 = vld [vmem:[%s3 + $0x44] sm:$0xf]
    %v215 = vld [vmem:[%s3 + $0x48] sm:$0xf]
    %v216 = vld [vmem:[%s3 + $0x4c] sm:$0xf]
    %v217 = vld [vmem:[%s3 + $0x50] sm:$0xf]
    %v218 = vld [vmem:[%s3 + $0x54] sm:$0xf]
    %v219 = vld [vmem:[%s3 + $0x58] sm:$0xf]
    %v220 = vld [vmem:[%s3 + $0x5c] sm:$0xf]
    %v221 = vld [vmem:[%s3 + $0x60] sm:$0xf]
    %v222 = vld [vmem:[%s3 + $0x64] sm:$0xf]
    %v223 = vld [vmem:[%s3 + $0x68] sm:$0xf]
    %v224 = vld [vmem:[%s3 + $0x6c] sm:$0xf]
    %v225 = vld [vmem:[%s3 + $0x70] sm:$0xf]
    %v226 = vld [vmem:[%s3 + $0x74] sm:$0xf]
    %v227 = vld [vmem:[%s3 + $0x78] sm:$0xf]
    %v228 = vld [vmem:[%s3 + $0x7c] sm:$0xf]
    %v229 = vld [vmem:[%s3 + $0x80] sm:$0xf]
    %v230 = vld [vmem:[%s3 + $0x84] sm:$0xf]
    %v231 = vld [vmem:[%s3 + $0x88] sm:$0xf]
    %v232 = vld [vmem:[%s3 + $0x8c] sm:$0xf]
    %v233 = vld [vmem:[%s3 + $0x90] sm:$0xf]
    %v234 = vld [vmem:[%s3 + $0x94] sm:$0xf]
    %v235 = vld [vmem:[%s3 + $0x98] sm:$0xf]
    %v236 = vld [vmem:[%s3 + $0x9c] sm:$0xf]
    %v237 = vld [vmem:[%s3 + $0xa0] sm:$0xf]
    %v238 = vld [vmem:[%s3 + $0xa4] sm:$0xf]
    %v239 = vld [vmem:[%s3 + $0xa8] sm:$0xf]
    %v240 = vld [vmem:[%s3 + $0xac] sm:$0xf]
    %v241 = vld [vmem:[%s3 + $0xb0] sm:$0xf]
    %v242 = vld [vmem:[%s3 + $0xb4] sm:$0xf]
    %v243 = vld [vmem:[%s3 + $0xb8] sm:$0xf]
    %v244 = vld [vmem:[%s3 + $0xbc] sm:$0xf]
    %v245 = vld [vmem:[%s3 + $0xc0] sm:$0xf]
    %v246 = vld [vmem:[%s3 + $0xc4] sm:$0xf]
    %v247 = vld [vmem:[%s3 + $0xc8] sm:$0xf]
    %v248 = vld [vmem:[%s3 + $0xcc] sm:$0xf]
    %v249 = vld [vmem:[%s3 + $0xd0] sm:$0xf]
    %v250 = vld [vmem:[%s3 + $0xd4] sm:$0xf]
    %v251 = vld [vmem:[%s3 + $0xd8] sm:$0xf]
    %v252 = vld [vmem:[%s3 + $0xdc] sm:$0xf]
    %v253 = vld [vmem:[%s3 + $0xe0] sm:$0xf]
    %v254 = vld [vmem:[%s3 + $0xe4] sm:$0xf]
    %v255 = vld [vmem:[%s3 + $0xe8] sm:$0xf]
    %v256 = vld [vmem:[%s3 + $0xec] sm:$0xf]
    %v257 = vld [vmem:[%s3 + $0xf0] sm:$0xf]
    %v258 = vld [vmem:[%s3 + $0xf4] sm:$0xf]
    %v259 = vld [vmem:[%s3 + $0xf8] sm:$0xf]
    %v260 = vld [vmem:[%s3 + $0xfc] sm:$0xf]
    %v261 = vld [vmem:[%s4] sm:$0x1]
    %v263 = vlaneseq
    %v264 = vshrl.u32 %v263, 7
    %v265 = vsub.s32 0, %v264
    %v266 = vrot.slane %v261, %v265
    %v332 = vunpack.c.l.b16 %v197
    %v333 = vunpack.c.l.b16 %v198
    %v334 = vunpack.c.l.b16 %v199
    %v335 = vunpack.c.l.b16 %v200
    %v336 = vunpack.c.l.b16 %v201
    %v337 = vunpack.c.l.b16 %v202
    %v338 = vunpack.c.l.b16 %v203
    %v339 = vunpack.c.l.b16 %v204
    %v340 = vunpack.c.l.b16 %v205
    %v341 = vunpack.c.l.b16 %v206
    %v342 = vunpack.c.l.b16 %v207
    %v343 = vunpack.c.l.b16 %v208
    %v344 = vunpack.c.l.b16 %v209
    %v345 = vunpack.c.l.b16 %v210
    %v346 = vunpack.c.l.b16 %v211
    %v347 = vunpack.c.l.b16 %v212
    %v348 = vunpack.c.l.b16 %v213
    %v349 = vunpack.c.l.b16 %v214
    %v350 = vunpack.c.l.b16 %v215
    %v351 = vunpack.c.l.b16 %v216
    %v352 = vunpack.c.l.b16 %v217
    %v353 = vunpack.c.l.b16 %v218
    %v354 = vunpack.c.l.b16 %v219
    %v355 = vunpack.c.l.b16 %v220
    %v356 = vunpack.c.l.b16 %v221
    %v357 = vunpack.c.l.b16 %v222
    %v358 = vunpack.c.l.b16 %v223
    %v359 = vunpack.c.l.b16 %v224
    %v360 = vunpack.c.l.b16 %v225
    %v361 = vunpack.c.l.b16 %v226
    %v362 = vunpack.c.l.b16 %v227
    %v363 = vunpack.c.l.b16 %v228
    %v364 = vunpack.c.l.b16 %v229
    %v365 = vunpack.c.l.b16 %v230
    %v366 = vunpack.c.l.b16 %v231
    %v367 = vunpack.c.l.b16 %v232
    %v368 = vunpack.c.l.b16 %v233
    %v369 = vunpack.c.l.b16 %v234
    %v370 = vunpack.c.l.b16 %v235
    %v371 = vunpack.c.l.b16 %v236
    %v372 = vunpack.c.l.b16 %v237
    %v373 = vunpack.c.l.b16 %v238
    %v374 = vunpack.c.l.b16 %v239
    %v375 = vunpack.c.l.b16 %v240
    %v376 = vunpack.c.l.b16 %v241
    %v377 = vunpack.c.l.b16 %v242
    %v378 = vunpack.c.l.b16 %v243
    %v379 = vunpack.c.l.b16 %v244
    %v380 = vunpack.c.l.b16 %v245
    %v381 = vunpack.c.l.b16 %v246
    %v382 = vunpack.c.l.b16 %v247
    %v383 = vunpack.c.l.b16 %v248
    %v384 = vunpack.c.l.b16 %v249
    %v385 = vunpack.c.l.b16 %v250
    %v386 = vunpack.c.l.b16 %v251
    %v387 = vunpack.c.l.b16 %v252
    %v388 = vunpack.c.l.b16 %v253
    %v389 = vunpack.c.l.b16 %v254
    %v390 = vunpack.c.l.b16 %v255
    %v391 = vunpack.c.l.b16 %v256
    %v392 = vunpack.c.l.b16 %v257
    %v393 = vunpack.c.l.b16 %v258
    %v394 = vunpack.c.l.b16 %v259
    %v395 = vunpack.c.l.b16 %v260
    %v396 = vpack.c.b16 %v333, %v332
    %v397 = vpack.c.b16 %v335, %v334
    %v398 = vpack.c.b16 %v337, %v336
    %v399 = vpack.c.b16 %v339, %v338
    %v400 = vpack.c.b16 %v341, %v340
    %v401 = vpack.c.b16 %v343, %v342
    %v402 = vpack.c.b16 %v345, %v344
    %v403 = vpack.c.b16 %v347, %v346
    %v404 = vpack.c.b16 %v349, %v348
    %v405 = vpack.c.b16 %v351, %v350
    %v406 = vpack.c.b16 %v353, %v352
    %v407 = vpack.c.b16 %v355, %v354
    %v408 = vpack.c.b16 %v357, %v356
    %v409 = vpack.c.b16 %v359, %v358
    %v410 = vpack.c.b16 %v361, %v360
    %v411 = vpack.c.b16 %v363, %v362
    %v412 = vpack.c.b16 %v365, %v364
    %v413 = vpack.c.b16 %v367, %v366
    %v414 = vpack.c.b16 %v369, %v368
    %v415 = vpack.c.b16 %v371, %v370
    %v416 = vpack.c.b16 %v373, %v372
    %v417 = vpack.c.b16 %v375, %v374
    %v418 = vpack.c.b16 %v377, %v376
    %v419 = vpack.c.b16 %v379, %v378
    %v420 = vpack.c.b16 %v381, %v380
    %v421 = vpack.c.b16 %v383, %v382
    %v422 = vpack.c.b16 %v385, %v384
    %v423 = vpack.c.b16 %v387, %v386
    %v424 = vpack.c.b16 %v389, %v388
    %v425 = vpack.c.b16 %v391, %v390
    %v426 = vpack.c.b16 %v393, %v392
    %v427 = vpack.c.b16 %v395, %v394
    %460 = vmatprep.subr.bf16.mxu0 0
    %461 = vmatpush1.bf16.msra.mxu0 %v396
    %462 = vmatprep.subr.bf16.mxu0 0
    %463 = vmatpush1.bf16.msra.mxu0 %v397
    %464 = vmatprep.subr.bf16.mxu0 0
    %465 = vmatpush1.bf16.msra.mxu0 %v398
    %466 = vmatprep.subr.bf16.mxu0 0
    %467 = vmatpush1.bf16.msra.mxu0 %v399
    %468 = vmatprep.subr.bf16.mxu0 0
    %469 = vmatpush1.bf16.msra.mxu0 %v400
    %470 = vmatprep.subr.bf16.mxu0 0
    %471 = vmatpush1.bf16.msra.mxu0 %v401
    %472 = vmatprep.subr.bf16.mxu0 0
    %473 = vmatpush1.bf16.msra.mxu0 %v402
    %474 = vmatprep.subr.bf16.mxu0 0
    %475 = vmatpush1.bf16.msra.mxu0 %v403
    %476 = vmatprep.subr.bf16.mxu0 0
    %477 = vmatpush1.bf16.msra.mxu0 %v404
    %478 = vmatprep.subr.bf16.mxu0 0
    %479 = vmatpush1.bf16.msra.mxu0 %v405
    %480 = vmatprep.subr.bf16.mxu0 0
    %481 = vmatpush1.bf16.msra.mxu0 %v406
    %482 = vmatprep.subr.bf16.mxu0 0
    %483 = vmatpush1.bf16.msra.mxu0 %v407
    %484 = vmatprep.subr.bf16.mxu0 0
    %485 = vmatpush1.bf16.msra.mxu0 %v408
    %486 = vmatprep.subr.bf16.mxu0 0
    %487 = vmatpush1.bf16.msra.mxu0 %v409
    %488 = vmatprep.subr.bf16.mxu0 0
    %489 = vmatpush1.bf16.msra.mxu0 %v410
    %490 = vmatprep.subr.bf16.mxu0 0
    %491 = vmatpush1.bf16.msra.mxu0 %v411
    %492 = vmatprep.mubr.bf16.mxu0 %v194
    %493 = vmatmul.mubr.bf16.gmra.mrb[0].mxu0 %v193
    %v494 = vpop.f32.mrb[0].mxu0
    %v495 = vadd.f32 %v266, %v494
    %v496 = vpop.f32.mrb[0].mxu0
    %v497 = vpop.f32.mrb[0].mxu0
    %v498 = vadd.f32 %v266, %v497
    %v499 = vpop.f32.mrb[0].mxu0
    %500 = vdwg.mxu0
    %501 = vmatprep.subr.bf16.mxu0 0
    %502 = vmatpush1.bf16.msra.mxu0 %v412
    %503 = vmatprep.subr.bf16.mxu0 0
    %504 = vmatpush1.bf16.msra.mxu0 %v413
    %505 = vmatprep.subr.bf16.mxu0 0
    %506 = vmatpush1.bf16.msra.mxu0 %v414
    %507 = vmatprep.subr.bf16.mxu0 0
    %508 = vmatpush1.bf16.msra.mxu0 %v415
    %509 = vmatprep.subr.bf16.mxu0 0
    %510 = vmatpush1.bf16.msra.mxu0 %v416
    %511 = vmatprep.subr.bf16.mxu0 0
    %512 = vmatpush1.bf16.msra.mxu0 %v417
    %513 = vmatprep.subr.bf16.mxu0 0
    %514 = vmatpush1.bf16.msra.mxu0 %v418
    %515 = vmatprep.subr.bf16.mxu0 0
    %516 = vmatpush1.bf16.msra.mxu0 %v419
    %517 = vmatprep.subr.bf16.mxu0 0
    %518 = vmatpush1.bf16.msra.mxu0 %v420
    %519 = vmatprep.subr.bf16.mxu0 0
    %520 = vmatpush1.bf16.msra.mxu0 %v421
    %521 = vmatprep.subr.bf16.mxu0 0
    %522 = vmatpush1.bf16.msra.mxu0 %v422
    %523 = vmatprep.subr.bf16.mxu0 0
    %524 = vmatpush1.bf16.msra.mxu0 %v423
    %525 = vmatprep.subr.bf16.mxu0 0
    %526 = vmatpush1.bf16.msra.mxu0 %v424
    %527 = vmatprep.subr.bf16.mxu0 0
    %528 = vmatpush1.bf16.msra.mxu0 %v425
    %529 = vmatprep.subr.bf16.mxu0 0
    %530 = vmatpush1.bf16.msra.mxu0 %v426
    %531 = vmatprep.subr.bf16.mxu0 0
    %532 = vmatpush1.bf16.msra.mxu0 %v427
    %533 = vmatprep.mubr.bf16.mxu0 %v196
    %534 = vmatmul.mubr.bf16.gmra.mrb[0].mxu0 %v195
    %v535 = vpop.f32.mrb[0].mxu0
    %v536 = vadd.f32 %v495, %v535
    %v537 = vpop.f32.mrb[0].mxu0
    %v538 = vpop.f32.mrb[0].mxu0
    %v539 = vadd.f32 %v498, %v538
    %v540 = vpop.f32.mrb[0].mxu0
    %541 = vdwg.mxu0
    %vm542 = vcmask 523264
    %543 = vst.msk [vmem:[#allocation2] sm:$0xff] %vm542, %v536
    %544 = vst.msk [vmem:[#allocation2 + $0x8] sm:$0xff] %vm542, %v539
    // Predicated region
    $region22: #{tpu_custom_call.1} parent=1 // pred_check
      _
    $region23: #{tpu_custom_call.1} parent=1 // pred_check_branch
      %546 = sbr.rel (0) target = $region25
    $region24: #{tpu_custom_call.1} parent=1 // pred_region
      %s548 = ssub.s32 256, 256
      %549 = vsyncadd [#allocation3], %s548
      %s550 = sshll.u32 [#allocation2], 4
      %s551 = int_to_ptr.vmem [resolvable:$true] %s550
      %556 = dma.vmem_to_hbm [thread:$0]  %s551, 256, %s5, [#allocation3], 128, 128, 8
    $region25: #{tpu_custom_call.1} parent=1 // pred_fallthru
      _
    // Predicated region
    $region26: #{tpu_custom_call.1} parent=1 // pred_check
      _
    $region27: #{tpu_custom_call.1} parent=1 // pred_check_branch
      %558 = sbr.rel (0) target = $region29
    $region28: #{tpu_custom_call.1} parent=1 // pred_region
      %559 = dma.done [#allocation3], 256
    $region29: #{tpu_custom_call.1} parent=1 // pred_fallthru
      _
    %560 = vsyncpa [#allocation3], 1

</llo_original>
